<compile_context>
chip_gen: v7x
topology: tpu7x:2x2x1
jax: 0.10.0
libtpu: 0.0.40
codegen_flags: <defaults>
</compile_context>

<pallas_src>
import functools

import jax
import jax.numpy as jnp
from jax.experimental import pallas as pl
from jax.experimental.pallas import tpu as pltpu

_LANE = 128
_SUBLANE = 8


def _round_up(a, b):
    return ((a + b - 1) // b) * b


def _conv_elu_bn_kernel(x_ref, w_ref, p_ref, o_ref):
    # x_ref: (1, K, tm)      im2col slab (K = 9*Cin), lane dim = row tile
    # w_ref: (Cout_p, K)     conv weight, Cout padded to a sublane multiple (8)
    # p_ref: (3, Cout_p, 1)  packed [conv bias, bn scale, bn shift]
    # o_ref: (1, Cout_p, tm)
    acc = jnp.dot(w_ref[...], x_ref[0], preferred_element_type=jnp.float32)
    a = acc + p_ref[0]                       # conv bias, broadcast over lanes
    # ELU(alpha=1): a if a > 0 else exp(a) - 1; clamp before exp so the
    # unselected branch never overflows. All elementwise math stays f32.
    act = jnp.where(a > 0, a, jnp.exp(jnp.minimum(a, 0.0)) - 1.0)
    # Inference BatchNorm folded into per-channel affine.
    y = act * p_ref[1] + p_ref[2]
    o_ref[0] = y.astype(o_ref.dtype)


@functools.partial(jax.jit, static_argnames=("tm", "eps"))
def input_transition_forward(x, conv_w, conv_b, gamma, beta,
                             running_mean, running_var, *, tm=4096, eps=1e-5):
    """InputTransition forward: BatchNorm2d(ELU(Conv2d(x, 3x3, pad=1))).

    x:       (N, Cin, H, W)  float32 (NCHW, PyTorch layout)
    conv_w:  (Cout, Cin, 3, 3)
    conv_b, gamma, beta, running_mean, running_var: (Cout,)  (BN eval mode)
    """
    N, Cin, H, W = x.shape
    Cout = conv_w.shape[0]
    HW = H * W
    K = 9 * Cin

    # --- im2col, channel-major, built straight from NCHW (no transpose) ------
    xp = jnp.pad(x, ((0, 0), (0, 0), (1, 1), (1, 1)))           # (N,Cin,H+2,W+2)
    cols = []
    for kh in range(3):
        for kw in range(3):
            cols.append(xp[:, :, kh:kh + H, kw:kw + W])         # (N,Cin,H,W)
    x9 = jnp.stack(cols, axis=1).reshape(N, K, HW)              # (N, 9*Cin, HW)
    x9 = x9.astype(jnp.float32)

    # --- conv weight -> (Cout_p, K); channels padded only to a multiple of 8 -
    Cout_p = _round_up(Cout, _SUBLANE)
    w2 = jnp.transpose(conv_w, (0, 2, 3, 1)).reshape(Cout, K)   # [co,(kh,kw,ci)]
    w2 = jnp.pad(w2.astype(jnp.float32), ((0, Cout_p - Cout), (0, 0)))

    # --- fold inference BatchNorm into scale/shift; pack params in one array -
    inv_std = 1.0 / jnp.sqrt(running_var.astype(jnp.float32) + eps)
    scale = gamma.astype(jnp.float32) * inv_std
    shift = beta.astype(jnp.float32) - running_mean.astype(jnp.float32) * scale
    params = jnp.stack([conv_b.astype(jnp.float32), scale, shift], axis=0)
    params = jnp.pad(params, ((0, 0), (0, Cout_p - Cout)))[..., None]  # (3,Cp,1)

    # --- lane-dim row tiling: big lane-dense tiles, pad HW (never assert) ----
    tm_eff = min(tm, _round_up(HW, _LANE))
    HWp = _round_up(HW, tm_eff)
    if HWp != HW:
        x9 = jnp.pad(x9, ((0, 0), (0, 0), (0, HWp - HW)))

    grid = (N, HWp // tm_eff)

    out_full = pl.pallas_call(
        _conv_elu_bn_kernel,
        out_shape=jax.ShapeDtypeStruct((N, Cout_p, HWp), x.dtype),
        grid_spec=pltpu.PrefetchScalarGridSpec(
            num_scalar_prefetch=0,
            grid=grid,
            in_specs=[
                pl.BlockSpec((1, K, tm_eff), lambda n, i: (n, 0, i)),
                pl.BlockSpec((Cout_p, K), lambda n, i: (0, 0)),
                pl.BlockSpec((3, Cout_p, 1), lambda n, i: (0, 0, 0)),
            ],
            out_specs=pl.BlockSpec((1, Cout_p, tm_eff), lambda n, i: (n, 0, i)),
        ),
        compiler_params=pltpu.CompilerParams(
            dimension_semantics=("parallel", "parallel"),
            vmem_limit_bytes=32 * 1024 * 1024,
        ),
    )(x9, w2, params)

    out = out_full[:, :Cout, :HW].reshape(N, Cout, H, W)
    return out.astype(x.dtype)


if __name__ == "__main__":
    # InputTransition(inputChans=4, outChans=8, activ=True, norm='bn')
    N, Cin, H, W = 2, 4, 16, 16
    Cout = 8
    eps = 1e-5

    key = jax.random.PRNGKey(0)
    kx, kw, kb, kg, kbt, km, kv = jax.random.split(key, 7)

    x = jax.random.normal(kx, (N, Cin, H, W), dtype=jnp.float32)

    # Deterministic synthetic parameters (PyTorch-style Conv2d init bounds).
    bound = 1.0 / ((Cin * 3 * 3) ** 0.5)
    conv_w = jax.random.uniform(kw, (Cout, Cin, 3, 3),
                                minval=-bound, maxval=bound, dtype=jnp.float32)
    conv_b = jax.random.uniform(kb, (Cout,), minval=-bound, maxval=bound,
                                dtype=jnp.float32)
    gamma = jax.random.uniform(kg, (Cout,), minval=0.5, maxval=1.5,
                               dtype=jnp.float32)
    beta = 0.1 * jax.random.normal(kbt, (Cout,), dtype=jnp.float32)
    running_mean = 0.1 * jax.random.normal(km, (Cout,), dtype=jnp.float32)
    running_var = jax.random.uniform(kv, (Cout,), minval=0.5, maxval=1.5,
                                     dtype=jnp.float32)

    out = input_transition_forward(x, conv_w, conv_b, gamma, beta,
                                   running_mean, running_var, eps=eps)
    out = jax.block_until_ready(out)
    assert out.shape == (N, Cout, H, W)

    # Pure-JAX reference: conv3x3(pad=1) -> ELU -> inference BatchNorm2d.
    conv_ref = jax.lax.conv_general_dilated(
        x, conv_w, window_strides=(1, 1), padding=((1, 1), (1, 1)),
        dimension_numbers=("NCHW", "OIHW", "NCHW"))
    conv_ref = conv_ref + conv_b.reshape(1, Cout, 1, 1)
    act_ref = jax.nn.elu(conv_ref)
    bcast = lambda v: v.reshape(1, Cout, 1, 1)
    ref = (act_ref - bcast(running_mean)) / jnp.sqrt(bcast(running_var) + eps)
    ref = ref * bcast(gamma) + bcast(beta)

    assert jnp.allclose(out, ref, atol=1e-4, rtol=1e-4), \
        float(jnp.max(jnp.abs(out - ref)))

    print("KERNEL_OK")
</pallas_src>

<mosaic_0001>
module attributes {stable_mosaic.version = 11 : i64} {
  func.func @_conv_elu_bn_kernel(%arg0: i32, %arg1: i32, %arg2: memref<1x36x256xf32, #tpu.memory_space<vmem>>, %arg3: memref<8x36xf32, #tpu.memory_space<vmem>>, %arg4: memref<3x8x1xf32, #tpu.memory_space<vmem>>, %arg5: memref<1x8x256xf32, #tpu.memory_space<vmem>>) attributes {dimension_semantics = [#tpu.dimension_semantics<parallel>, #tpu.dimension_semantics<parallel>], iteration_bounds = array<i64: 2, 1>, scalar_prefetch = 0 : i64, scratch_operands = 0 : i64, tpu.core_type = #tpu.core_type<tc>, window_params = [{transform_indices = @transform_0, window_bounds = array<i64: 1, 36, 256>}, {pipeline_mode = #tpu.pipeline_mode<synchronous>, transform_indices = @transform_1, window_bounds = array<i64: 8, 36>}, {pipeline_mode = #tpu.pipeline_mode<synchronous>, transform_indices = @transform_2, window_bounds = array<i64: 3, 8, 1>}, {transform_indices = @transform_3, window_bounds = array<i64: 1, 8, 256>}]} {
    %c0 = arith.constant 0 : index
    %c0_0 = arith.constant 0 : index
    %0 = vector.load %arg3[%c0, %c0_0] : memref<8x36xf32, #tpu.memory_space<vmem>>, vector<8x36xf32>
    %c0_1 = arith.constant 0 : index
    %c0_2 = arith.constant 0 : index
    %c0_3 = arith.constant 0 : index
    %1 = vector.load %arg2[%c0_1, %c0_2, %c0_3] : memref<1x36x256xf32, #tpu.memory_space<vmem>>, vector<1x36x256xf32>
    %2 = vector.shape_cast %1 : vector<1x36x256xf32> to vector<36x256xf32>
    %cst = arith.constant dense<0.000000e+00> : vector<8x256xf32>
    %3 = tpu.matmul %0, %2, %cst {dimension_numbers = #tpu.dot_dimension_numbers<[1], [0], [0], [1], [0, 0, 1, 1], [], []>} : vector<8x36xf32>, vector<36x256xf32>, vector<8x256xf32> -> vector<8x256xf32>
    %c0_4 = arith.constant 0 : index
    %c0_5 = arith.constant 0 : index
    %c0_6 = arith.constant 0 : index
    %4 = vector.load %arg4[%c0_4, %c0_5, %c0_6] : memref<3x8x1xf32, #tpu.memory_space<vmem>>, vector<1x8x1xf32>
    %5 = vector.shape_cast %4 : vector<1x8x1xf32> to vector<8x1xf32>
    %6 = vector.broadcast %5 : vector<8x1xf32> to vector<8x256xf32>
    %7 = arith.addf %3, %6 : vector<8x256xf32>
    %cst_7 = arith.constant 0.000000e+00 : f32
    %8 = vector.broadcast %cst_7 : f32 to vector<8x256xf32>
    %9 = arith.cmpf ogt, %7, %8 : vector<8x256xf32>
    %cst_8 = arith.constant 0.000000e+00 : f32
    %10 = vector.broadcast %cst_8 : f32 to vector<8x256xf32>
    %11 = arith.minimumf %7, %10 : vector<8x256xf32>
    %12 = math.exp %11 : vector<8x256xf32>
    %cst_9 = arith.constant 1.000000e+00 : f32
    %13 = vector.broadcast %cst_9 : f32 to vector<8x256xf32>
    %14 = arith.subf %12, %13 : vector<8x256xf32>
    %15 = arith.select %9, %7, %14 : vector<8x256xi1>, vector<8x256xf32>
    %c1 = arith.constant 1 : index
    %c0_10 = arith.constant 0 : index
    %c0_11 = arith.constant 0 : index
    %16 = vector.load %arg4[%c1, %c0_10, %c0_11] : memref<3x8x1xf32, #tpu.memory_space<vmem>>, vector<1x8x1xf32>
    %17 = vector.shape_cast %16 : vector<1x8x1xf32> to vector<8x1xf32>
    %18 = vector.broadcast %17 : vector<8x1xf32> to vector<8x256xf32>
    %19 = arith.mulf %15, %18 : vector<8x256xf32>
    %c2 = arith.constant 2 : index
    %c0_12 = arith.constant 0 : index
    %c0_13 = arith.constant 0 : index
    %20 = vector.load %arg4[%c2, %c0_12, %c0_13] : memref<3x8x1xf32, #tpu.memory_space<vmem>>, vector<1x8x1xf32>
    %21 = vector.shape_cast %20 : vector<1x8x1xf32> to vector<8x1xf32>
    %22 = vector.broadcast %21 : vector<8x1xf32> to vector<8x256xf32>
    %23 = arith.addf %19, %22 : vector<8x256xf32>
    %c0_14 = arith.constant 0 : index
    %c0_15 = arith.constant 0 : index
    %c0_16 = arith.constant 0 : index
    %24 = vector.load %arg5[%c0_14, %c0_15, %c0_16] : memref<1x8x256xf32, #tpu.memory_space<vmem>>, vector<1x8x256xf32>
    %25 = vector.shape_cast %24 : vector<1x8x256xf32> to vector<8x256xf32>
    %26 = vector.shape_cast %23 : vector<8x256xf32> to vector<1x8x256xf32>
    tpu.vector_store %arg5[%c0_14, %c0_15, %c0_16], %26 {strides = array<i32>} : memref<1x8x256xf32, #tpu.memory_space<vmem>>, vector<1x8x256xf32>,
    return
  }
  func.func @transform_0(%arg0: i32, %arg1: i32) -> (i32, i32, i32) {
    %c0_i32 = arith.constant 0 : i32
    %c0_i32_0 = arith.constant 0 : i32
    return %arg0, %c0_i32, %arg1 : i32, i32, i32
  }
  func.func @transform_1(%arg0: i32, %arg1: i32) -> (i32, i32) {
    %c0_i32 = arith.constant 0 : i32
    %c0_i32_0 = arith.constant 0 : i32
    %c0_i32_1 = arith.constant 0 : i32
    return %c0_i32, %c0_i32_0 : i32, i32
  }
  func.func @transform_2(%arg0: i32, %arg1: i32) -> (i32, i32, i32) {
    %c0_i32 = arith.constant 0 : i32
    %c0_i32_0 = arith.constant 0 : i32
    %c0_i32_1 = arith.constant 0 : i32
    %c0_i32_2 = arith.constant 0 : i32
    return %c0_i32, %c0_i32_0, %c0_i32_1 : i32, i32, i32
  }
  func.func @transform_3(%arg0: i32, %arg1: i32) -> (i32, i32, i32) {
    %c0_i32 = arith.constant 0 : i32
    %c0_i32_0 = arith.constant 0 : i32
    return %arg0, %c0_i32, %arg1 : i32, i32, i32
  }
}

</mosaic_0001>

<llo_original>
// kernel: input_transition_forward.1
$region0: #{input_transition_forward.1}
  #allocation0 [shape = 'u32[]', space=smem, size = 0x4, offset = 0x4, fixed_abs, tag = 'smem constant byte address 0x4 - core index']
  #allocation1 [shape = 'u32[144,128]{1,0:T(1,128)}', space=vmem, size = 0x12000, scoped, tag = 'internal scratch']
  %s0 = inlined_call_operand.vmem [shape: f32[2,36,256], index: 0, kind: input, shape index: {}]
  %s1 = inlined_call_operand.vmem [shape: f32[8,36], index: 1, kind: input, shape index: {}]
  %s2 = inlined_call_operand.vmem [shape: f32[3,8,1], index: 2, kind: input, shape index: {}]
  %s3 = inlined_call_operand.vmem [shape: f32[2,8,256], index: 3, kind: output, shape index: {}]
  %s4 = sld [smem:[#allocation0]]
  $region45: #{input_transition_forward.1} parent=0
    _
  %s6 = ssub.s32 1, %s4
  %s7 = scalar_select 0, %s6, %s4
  loop: start=0, step=1, limit=4
  $region2: #{input_transition_forward.1} parent=0 // loop_pre_header
    _
  $region3: #{input_transition_forward.1} parent=0 // loop_header
    %s9 = sphi 0, %s13
    %p10 = scmp.ge.s32.totalorder %s9, 4
    %s16 = sphi 0, %s28
    %s17 = sphi 0, %s24
    %s18 = sphi 0, %s16
    %s19 = sphi 0, %s17
    %s20 = sphi 0, %s18
    %s21 = sphi 0, %s19
    %s33 = sphi 0, %s35
    %s36 = sphi 0, %s33
    %s37 = sphi 0, %s36
    %s53 = sphi 0, %s37
    %s57 = sphi 0, %s57
    %s59 = sphi 0, %s57
    %s60 = sphi 0, %s59
    %s74 = sphi 0, %s60
    %s78 = sphi 0, %s78
    %s80 = sphi 0, %s78
    %s81 = sphi 0, %s80
    %s95 = sphi 0, %s81
    %s103 = sphi 0, %s105
    %s106 = sphi 0, %s103
    %s107 = sphi 0, %s106
    %s123 = sphi 0, %s107
  $region4: #{input_transition_forward.1} parent=0 // loop_header_branch
    %12 = sbr.rel (%p10) target = $region8
  $region5: #{input_transition_forward.1} parent=0 // loop_body
    %s14 = ssub.s32 %s9, 1
    %s15 = ssub.s32 %s9, 2
    %s22 = sadd.s32 1, %s17
    %p23 = scmp.ge.s32.totalorder %s22, 1
    %s24 = scalar_select %p23, 0, %s22
    %s25 = sadd.s32 1, %s16
    %s26 = scalar_select %p23, %s25, %s16
    %p27 = scmp.ge.s32.totalorder %s26, 2
    %s28 = scalar_select %p27, 0, %s26
    %s29 = ssub.s32 %s16, %s28
    %s30 = ssub.s32 %s17, %s24
    %s31 = sor.u32 %s29, %s30
    %p32 = scmp.eq.s32.totalorder %s31, 0
    %s34 = sadd.s32 %s33, 1
    %s35 = scalar_select %p32, %s33, %s34
    %p38 = pneg %p32
    %p39 = scmp.eq.s32.totalorder %s9, 1
    %p40 = por %p38, %p39
    %p41 = scmp.ne.s32.totalorder %s33, %s36
    %p42 = scmp.eq.s32.totalorder %s9, 0
    %p43 = por %p41, %p42
    %p44 = scmp.ne.s32.totalorder %s33, %s36
    %p45 = scmp.eq.s32.totalorder %s14, 1
    %p46 = por %p44, %p45
    %p47 = scmp.ne.s32.totalorder %s36, %s37
    %p48 = scmp.eq.s32.totalorder %s14, 0
    %p49 = por %p47, %p48
    %p50 = scmp.ne.s32.totalorder %s36, %s37
    %p51 = scmp.eq.s32.totalorder %s15, 1
    %p52 = por %p50, %p51
    %p54 = scmp.ne.s32.totalorder %s37, %s53
    %p55 = scmp.eq.s32.totalorder %s15, 0
    %p56 = por %p54, %p55
    %s58 = sadd.s32 %s57, 1
    %p61 = scmp.eq.s32.totalorder %s9, 1
    %p62 = scmp.ne.s32.totalorder %s57, %s59
    %p63 = scmp.eq.s32.totalorder %s9, 0
    %p64 = por %p62, %p63
    %p65 = scmp.ne.s32.totalorder %s57, %s59
    %p66 = scmp.eq.s32.totalorder %s14, 1
    %p67 = por %p65, %p66
    %p68 = scmp.ne.s32.totalorder %s59, %s60
    %p69 = scmp.eq.s32.totalorder %s14, 0
    %p70 = por %p68, %p69
    %p71 = scmp.ne.s32.totalorder %s59, %s60
    %p72 = scmp.eq.s32.totalorder %s15, 1
    %p73 = por %p71, %p72
    %p75 = scmp.ne.s32.totalorder %s60, %s74
    %p76 = scmp.eq.s32.totalorder %s15, 0
    %p77 = por %p75, %p76
    %s79 = sadd.s32 %s78, 1
    %p82 = scmp.eq.s32.totalorder %s9, 1
    %p83 = scmp.ne.s32.totalorder %s78, %s80
    %p84 = scmp.eq.s32.totalorder %s9, 0
    %p85 = por %p83, %p84
    %p86 = scmp.ne.s32.totalorder %s78, %s80
    %p87 = scmp.eq.s32.totalorder %s14, 1
    %p88 = por %p86, %p87
    %p89 = scmp.ne.s32.totalorder %s80, %s81
    %p90 = scmp.eq.s32.totalorder %s14, 0
    %p91 = por %p89, %p90
    %p92 = scmp.ne.s32.totalorder %s80, %s81
    %p93 = scmp.eq.s32.totalorder %s15, 1
    %p94 = por %p92, %p93
    %p96 = scmp.ne.s32.totalorder %s81, %s95
    %p97 = scmp.eq.s32.totalorder %s15, 0
    %p98 = por %p96, %p97
    %s99 = ssub.s32 %s16, %s28
    %s100 = ssub.s32 %s17, %s24
    %s101 = sor.u32 %s99, %s100
    %p102 = scmp.eq.s32.totalorder %s101, 0
    %s104 = sadd.s32 %s103, 1
    %s105 = scalar_select %p102, %s103, %s104
    %p108 = pneg %p102
    %p109 = scmp.eq.s32.totalorder %s9, 1
    %p110 = por %p108, %p109
    %p111 = scmp.ne.s32.totalorder %s103, %s106
    %p112 = scmp.eq.s32.totalorder %s9, 0
    %p113 = por %p111, %p112
    %p114 = scmp.ne.s32.totalorder %s103, %s106
    %p115 = scmp.eq.s32.totalorder %s14, 1
    %p116 = por %p114, %p115
    %p117 = scmp.ne.s32.totalorder %s106, %s107
    %p118 = scmp.eq.s32.totalorder %s14, 0
    %p119 = por %p117, %p118
    %p120 = scmp.ne.s32.totalorder %s106, %s107
    %p121 = scmp.eq.s32.totalorder %s15, 1
    %p122 = por %p120, %p121
    %p124 = scmp.ne.s32.totalorder %s107, %s123
    %p125 = scmp.eq.s32.totalorder %s15, 0
    %p126 = por %p124, %p125
    %p127 = scmp.le.s32.totalorder 1, %s9
    %p128 = scmp.lt.s32.totalorder %s9, 3
    %p129 = pnand %p127, %p128
    %p130 = pneg %p129
    // Predicated region
    $region9: #{input_transition_forward.1} parent=5 // pred_check
      _
    $region10: #{input_transition_forward.1} parent=5 // pred_check_branch
      %132 = sbr.rel (%p129) target = $region12
    $region11: #{input_transition_forward.1} parent=5 // pred_region
      %s133 = ssub.s32 %s9, 1
      // Predicated region
      $region13: #{input_transition_forward.1} parent=11 // pred_check
        %p134 = pneg %p70
      $region14: #{input_transition_forward.1} parent=11 // pred_check_branch
        %136 = sbr.rel (%p134) target = $region16
      $region15: #{input_transition_forward.1} parent=11 // pred_region
        _
      $region16: #{input_transition_forward.1} parent=11 // pred_fallthru
        _
      // Predicated region
      $region17: #{input_transition_forward.1} parent=11 // pred_check
        %p137 = pneg %p91
      $region18: #{input_transition_forward.1} parent=11 // pred_check_branch
        %139 = sbr.rel (%p137) target = $region20
      $region19: #{input_transition_forward.1} parent=11 // pred_region
        _
      $region20: #{input_transition_forward.1} parent=11 // pred_fallthru
        _
    $region12: #{input_transition_forward.1} parent=5 // pred_fallthru
      _
    %p140 = scmp.lt.s32.totalorder %s9, 2
    // Predicated region
    $region21: #{input_transition_forward.1} parent=5 // pred_check
      %p141 = pneg %p140
    $region22: #{input_transition_forward.1} parent=5 // pred_check_branch
      %143 = sbr.rel (%p141) target = $region24
    $region23: #{input_transition_forward.1} parent=5 // pred_region
      // Predicated region
      $region25: #{input_transition_forward.1} parent=23 // pred_check
        %p144 = pneg %p43
      $region26: #{input_transition_forward.1} parent=23 // pred_check_branch
        %146 = sbr.rel (%p144) target = $region28
      $region27: #{input_transition_forward.1} parent=23 // pred_region
        %s147 = smul.u32 2, %s17
        %p148 = scmp.lt.s32.totalorder %s16, 1
        %s149 = scalar_select %p148, %s16, 1
        %p150 = scmp.lt.s32.totalorder %s147, 1
        %s151 = scalar_select %p150, %s147, 1
        %s152 = smul.addr %s149, 10
        %s153 = sadd.s32 %s151, %s152
        %s154 = smul.addr %s153, 8
        %s155 = scalar_lea.vmem %s0, %s154
        %s156 = smul.u32 2, %s17
      $region28: #{input_transition_forward.1} parent=23 // pred_fallthru
        _
    $region24: #{input_transition_forward.1} parent=5 // pred_fallthru
      _
    %p157 = scmp.le.s32.totalorder 1, %s9
    %p158 = scmp.lt.s32.totalorder %s9, 3
    %p159 = pnand %p157, %p158
    %p160 = pneg %p159
    // Predicated region
    $region29: #{input_transition_forward.1} parent=5 // pred_check
      _
    $region30: #{input_transition_forward.1} parent=5 // pred_check_branch
      %162 = sbr.rel (%p159) target = $region32
    $region31: #{input_transition_forward.1} parent=5 // pred_region
      %s163 = ssub.s32 %s9, 1
      %s164 = smul.u32 2, %s19
      %p165 = scmp.lt.s32.totalorder %s18, 1
      %s166 = scalar_select %p165, %s18, 1
      %p167 = scmp.lt.s32.totalorder %s164, 1
      %s168 = scalar_select %p167, %s164, 1
      %s169 = smul.addr %s166, 10
      %s170 = sadd.s32 %s168, %s169
      %s171 = smul.addr %s170, 8
      %s172 = scalar_lea.vmem %s0, %s171
      %p173 = pneg %p49
      %p174 = pneg %p46
      %p175 = pneg %p70
      %p176 = pneg %p67
      %p177 = pneg %p91
      %p178 = pneg %p88
      %p179 = pneg %p119
      %p180 = pneg %p116
      %s181 = smul.u32 2, %s19
      %p182 = scmp.lt.s32.totalorder %s18, 1
      %s183 = scalar_select %p182, %s18, 1
      %p184 = scmp.lt.s32.totalorder %s181, 1
      %s185 = scalar_select %p184, %s181, 1
      %s186 = smul.addr %s183, 2
      %s187 = sadd.s32 %s185, %s186
      %s188 = smul.addr %s187, 8
      %s189 = scalar_lea.vmem %s3, %s188
      %s190 = smul.u32 2, %s19
      %p191 = scmp.lt.s32.totalorder %s18, 1
      %s192 = scalar_select %p191, %s18, 1
      %p193 = scmp.lt.s32.totalorder %s190, 1
      %s194 = scalar_select %p193, %s190, 1
      %s195 = smul.addr %s192, 10
      %s196 = sadd.s32 %s194, %s195
      %s197 = smul.addr %s196, 8
      %s198 = scalar_lea.vmem %s0, %s197
      %s199 = smul.u32 2, %s19
      %s200 = smul.u32 2, %s19
      %p201 = scmp.lt.s32.totalorder %s18, 1
      %s202 = scalar_select %p201, %s18, 1
      %p203 = scmp.lt.s32.totalorder %s200, 1
      %s204 = scalar_select %p203, %s200, 1
      %s205 = smul.addr %s202, 2
      %s206 = sadd.s32 %s204, %s205
      %s207 = smul.addr %s206, 8
      %s208 = scalar_lea.vmem %s3, %s207
      %s209 = smul.u32 2, %s19
      %v210 = vld [vmem:[%s1] sm:$0xff]
      %v211 = vld [vmem:[%s198] sm:$0xff]
      %v212 = vld [vmem:[%s198 + $0x8] sm:$0xff]
      %v213 = vld [vmem:[%s198 + $0x10] sm:$0xff]
      %v214 = vld [vmem:[%s198 + $0x18] sm:$0xff]
      %v215 = vld [vmem:[%s198 + $0x20] sm:$0xff]
      %v216 = vld [vmem:[%s198 + $0x28] sm:$0xff]
      %v217 = vld [vmem:[%s198 + $0x30] sm:$0xff]
      %v218 = vld [vmem:[%s198 + $0x38] sm:$0xff]
      %v219 = vld [vmem:[%s198 + $0x40] sm:$0xf]
      %v220 = vld [vmem:[%s198 + $0x48] sm:$0xf]
      %v221 = vld [vmem:[%s2] sm:$0xff]
      %223 = vset.pattern.permute.xlu0 0
      %224 = vperm.xlu0 %223, %v221
      %v225 = vpop.permute.xlu0 %224
      %vm227 = vcmask 293888
      %v229 = vsel %vm227, %v210, 0
      %vm231 = vcmask 1043456
      %v233 = vsel %vm231, %v219, 0
      %v236 = vsel %vm231, %v220, 0
      %238 = vmatprep.subr.mxu0 %v212
      %239 = vmatpush1.msra.mxu0 %v211
      %240 = vmatprep.subr.mxu0 %v214
      %241 = vmatpush1.msra.mxu0 %v213
      %242 = vmatprep.subr.mxu0 %v216
      %243 = vmatpush1.msra.mxu0 %v215
      %244 = vmatprep.subr.mxu0 %v218
      %245 = vmatpush1.msra.mxu0 %v217
      %246 = vmatprep.subr.mxu0 %v236
      %247 = vmatpush1.msra.mxu0 %v233
      %248 = vmatprep.subr.mxu0 0.0
      %249 = vmatpush1.msra.mxu0 0.0
      %250 = vmatprep.subr.mxu0 0.0
      %251 = vmatpush1.msra.mxu0 0.0
      %252 = vmatprep.subr.mxu0 0.0
      %253 = vmatpush1.msra.mxu0 0.0
      %254 = vmatprep.subr.mxu0 0.0
      %255 = vmatpush1.msra.mxu0 0.0
      %256 = vmatprep.subr.mxu0 0.0
      %257 = vmatpush1.msra.mxu0 0.0
      %258 = vmatprep.subr.mxu0 0.0
      %259 = vmatpush1.msra.mxu0 0.0
      %260 = vmatprep.subr.mxu0 0.0
      %261 = vmatpush1.msra.mxu0 0.0
      %262 = vmatprep.subr.mxu0 0.0
      %263 = vmatpush1.msra.mxu0 0.0
      %264 = vmatprep.subr.mxu0 0.0
      %265 = vmatpush1.msra.mxu0 0.0
      %266 = vmatprep.subr.mxu0 0.0
      %267 = vmatpush1.msra.mxu0 0.0
      %268 = vmatprep.subr.mxu0 0.0
      %269 = vmatpush1.msra.mxu0 0.0
      %270 = vmatprep.subr.mxu0 0.0
      %271 = vmatpush1.msra.mxu0 0.0
      %272 = vmatprep.subr.mxu0 0.0
      %273 = vmatpush1.msra.mxu0 0.0
      %274 = vmatprep.subr.mxu0 0.0
      %275 = vmatpush1.msra.mxu0 0.0
      %276 = vmatprep.subr.mxu0 0.0
      %277 = vmatpush1.msra.mxu0 0.0
      %278 = vmatprep.subr.mxu0 0.0
      %279 = vmatpush1.msra.mxu0 0.0
      %280 = vmatprep.subr.mxu0 0.0
      %281 = vmatpush1.msra.mxu0 0.0
      %282 = vmatprep.subr.mxu0 0.0
      %283 = vmatpush1.msra.mxu0 0.0
      %284 = vmatprep.subr.mxu0 0.0
      %285 = vmatpush1.msra.mxu0 0.0
      %286 = vmatprep.subr.mxu0 0.0
      %287 = vmatpush1.msra.mxu0 0.0
      %288 = vmatprep.subr.mxu0 0.0
      %289 = vmatpush1.msra.mxu0 0.0
      %290 = vmatprep.subr.mxu0 0.0
      %291 = vmatpush1.msra.mxu0 0.0
      %292 = vmatprep.subr.mxu0 0.0
      %293 = vmatpush1.msra.mxu0 0.0
      %294 = vmatprep.subr.mxu0 0.0
      %295 = vmatpush1.msra.mxu0 0.0
      %296 = vmatprep.subr.mxu0 0.0
      %297 = vmatpush1.msra.mxu0 0.0
      %298 = vmatprep.subr.mxu0 0.0
      %299 = vmatpush1.msra.mxu0 0.0
      %300 = vmatprep.subr.mxu0 0.0
      %301 = vmatpush1.msra.mxu0 0.0
      %302 = vmatprep.mubr.f32.mxu0 0.0
      %303 = vmatmul.mubr.f32.gmra.mrb[0].mxu0 %v229
      %v304 = vpop.f32.mrb[0].mxu0
      %v305 = vadd.f32 %v225, %v304
      %v306 = vpop.f32.mrb[0].mxu0
      %v307 = vadd.f32 %v225, %v306
      %308 = vdwg.mxu0
      %vm309 = vcmp.gt.f32.partialorder %v305, 0.0
      %vm310 = vcmp.gt.f32.partialorder %v307, 0.0
      %v311 = vmin.f32 %v305, 0.0
      %v312 = vmin.f32 %v307, 0.0
      %v313 = vmul.f32 %v311, 1.442695
      %v314 = vpow.pop %v313
      %v315 = vmul.f32 %v312, 1.442695
      %v316 = vpow.pop %v315
      %v317 = vsub.f32 %v314, 1.0
      %v318 = vsub.f32 %v316, 1.0
      %v319 = vsel %vm309, %v305, %v317
      %v320 = vsel %vm310, %v307, %v318
      %s321 = scalar_lea.vmem %s2, 8
      %v322 = vld [vmem:[%s321] sm:$0xff]
      %324 = vset.pattern.permute.xlu0 0
      %325 = vperm.xlu0 %324, %v322
      %v326 = vpop.permute.xlu0 %325
      %v328 = vmul.f32 %v319, %v326
      %v329 = vmul.f32 %v320, %v326
      %s330 = scalar_lea.vmem %s2, 16
      %v331 = vld [vmem:[%s330] sm:$0xff]
      %333 = vset.pattern.permute.xlu0 0
      %334 = vperm.xlu0 %333, %v331
      %v335 = vpop.permute.xlu0 %334
      %v337 = vadd.f32 %v328, %v335
      %v338 = vadd.f32 %v329, %v335
      %339 = vst [vmem:[%s208] sm:$0xff] %v337
      %340 = vst [vmem:[%s208 + $0x8] sm:$0xff] %v338
      %s341 = smul.u32 2, %s19
      %p342 = scmp.lt.s32.totalorder %s18, 1
      %s343 = scalar_select %p342, %s18, 1
      %p344 = scmp.lt.s32.totalorder %s341, 1
      %s345 = scalar_select %p344, %s341, 1
      %s346 = smul.addr %s343, 2
      %s347 = sadd.s32 %s345, %s346
      %s348 = smul.addr %s347, 8
      %s349 = scalar_lea.vmem %s3, %s348
      // Predicated region
      $region33: #{input_transition_forward.1} parent=31 // pred_check
        %p350 = pneg %p116
      $region34: #{input_transition_forward.1} parent=31 // pred_check_branch
        %352 = sbr.rel (%p350) target = $region36
      $region35: #{input_transition_forward.1} parent=31 // pred_region
        %s353 = smul.u32 2, %s19
      $region36: #{input_transition_forward.1} parent=31 // pred_fallthru
        _
    $region32: #{input_transition_forward.1} parent=5 // pred_fallthru
      _
    %p354 = scmp.le.s32.totalorder 2, %s9
    // Predicated region
    $region37: #{input_transition_forward.1} parent=5 // pred_check
      %p355 = pneg %p354
    $region38: #{input_transition_forward.1} parent=5 // pred_check_branch
      %357 = sbr.rel (%p355) target = $region40
    $region39: #{input_transition_forward.1} parent=5 // pred_region
      %s358 = ssub.s32 %s9, 2
      // Predicated region
      $region41: #{input_transition_forward.1} parent=39 // pred_check
        %p359 = pneg %p122
      $region42: #{input_transition_forward.1} parent=39 // pred_check_branch
        %361 = sbr.rel (%p359) target = $region44
      $region43: #{input_transition_forward.1} parent=39 // pred_region
        %s362 = smul.u32 2, %s21
        %p363 = scmp.lt.s32.totalorder %s20, 1
        %s364 = scalar_select %p363, %s20, 1
        %p365 = scmp.lt.s32.totalorder %s362, 1
        %s366 = scalar_select %p365, %s362, 1
        %s367 = smul.addr %s364, 2
        %s368 = sadd.s32 %s366, %s367
        %s369 = smul.addr %s368, 8
        %s370 = scalar_lea.vmem %s3, %s369
      $region44: #{input_transition_forward.1} parent=39 // pred_fallthru
        _
    $region40: #{input_transition_forward.1} parent=5 // pred_fallthru
      _
  $region6: #{input_transition_forward.1} parent=0 // loop_footer
    %s13 = sadd.s32 1, %s9
  $region7: #{input_transition_forward.1} parent=0 // loop_footer_branch
    %8 = sbr.rel target = $region3
  $region8: #{input_transition_forward.1} parent=0 // loop_exit
    _

</llo_original>
